<compile_context>
chip_gen: v7x
topology: tpu7x:2x2x1
jax: 0.10.0
libtpu: 0.0.40
codegen_flags: <defaults>
</compile_context>

<pallas_src>
import jax
import jax.numpy as jnp
from jax.experimental import pallas as pl
from jax.experimental.pallas import tpu as pltpu


def _chamfer_kernel(gt_ref, genT_ref, rowmin_ref, colmin_ref):
    j = pl.program_id(1)  # gen tile (inner, reduction for the row-min carry)

    # Homogeneous coordinates: this single MXU matmul is already
    #   ||gt||^2 + ||gen||^2 - 2 * gt . gen   for every (row, col) pair.
    cross = jax.lax.dot_general(
        gt_ref[...], genT_ref[...], (((1,), (0,)), ((), ())),
        preferred_element_type=jnp.float32)                  # (tm, tn)
    d = jnp.maximum(cross, 0.0)

    # gt -> gen: running min across gen tiles, carried in the resident output block.
    rmin = jnp.min(d, axis=1, keepdims=True)                 # (tm, 1)
    prev = jnp.where(j == 0, jnp.inf, rowmin_ref[...])       # discard stale block at j == 0
    rowmin_ref[...] = jnp.minimum(prev, rmin)

    # gen -> gt: per-(gt-tile, gen-tile) partial column minima; min over gt tiles happens in JAX.
    colmin_ref[...] = jnp.min(d, axis=0, keepdims=True)[None]  # (1, 1, tn)


def _round_up(x, m):
    return (x + m - 1) // m * m


def chamfer_distance(gt_points_l, gen_points_l, *, tm=512, tn=2048):
    # Glue: squeeze (mirrors the PyTorch .squeeze()), cast to f32.
    gt = jnp.squeeze(gt_points_l).astype(jnp.float32)    # (N, D)
    gen = jnp.squeeze(gen_points_l).astype(jnp.float32)  # (M, D)
    n_gt, d = gt.shape
    n_gen, d2 = gen.shape
    assert d == d2

    # Shared-mean centering: translation-invariant; improves conditioning of the
    # ||a||^2 + ||b||^2 - 2ab expansion for small nearest-neighbor distances.
    center = (jnp.sum(gt, axis=0) + jnp.sum(gen, axis=0)) / jnp.float32(n_gt + n_gen)
    gt = gt - center
    gen = gen - center

    # Tile sizes: tm multiple of 8, tn multiple of 128; clamp to the (rounded-up) cloud sizes.
    k_pad = max(8, _round_up(d + 2, 8))
    tm = _round_up(min(tm, _round_up(n_gt, 8)), 8)
    tn = _round_up(min(tn, _round_up(n_gen, 128)), 128)
    n_gt_pad = _round_up(n_gt, tm)
    n_gen_pad = _round_up(n_gen, tn)

    # Sentinel padding: padded points sit at a huge (but finite-in-f32-after-squaring) coordinate,
    # so all distances involving them are huge and never win a min for a real point; the padded
    # entries of the outputs are sliced off below.  (pad^2 * D ~ 3e34 << f32 max.)
    BIG = 1e17
    gt_p = jnp.pad(gt, ((0, n_gt_pad - n_gt), (0, 0)), constant_values=BIG)
    gen_p = jnp.pad(gen, ((0, n_gen_pad - n_gen), (0, 0)), constant_values=BIG)

    # Homogeneous-coordinate operands (squared norms folded into the matmul's K dimension).
    gt_sq = jnp.sum(gt_p * gt_p, axis=1, keepdims=True)       # (Np, 1)
    gen_sq = jnp.sum(gen_p * gen_p, axis=1, keepdims=True)    # (Mp, 1)
    lhs = jnp.concatenate(
        [gt_p, gt_sq, jnp.ones((n_gt_pad, 1), jnp.float32),
         jnp.zeros((n_gt_pad, k_pad - d - 2), jnp.float32)], axis=1)       # (Np, K)
    rhs = jnp.concatenate(
        [-2.0 * gen_p, jnp.ones((n_gen_pad, 1), jnp.float32), gen_sq,
         jnp.zeros((n_gen_pad, k_pad - d - 2), jnp.float32)], axis=1).T    # (K, Mp), lane-dense

    ni = n_gt_pad // tm
    nj = n_gen_pad // tn

    # Explicit scoped-VMEM budget: a few block-sized temporaries + double-buffered streams,
    # floored at 32 MiB and capped well under v7x's 64 MiB physical VMEM.
    vmem_limit = int(min(48 * 2**20, max(32 * 2**20, 6 * tm * tn * 4)))

    rowmin, colmin = pl.pallas_call(
        _chamfer_kernel,
        out_shape=(
            jax.ShapeDtypeStruct((n_gt_pad, 1), jnp.float32),        # per-gt-point min dist^2
            jax.ShapeDtypeStruct((ni, 1, n_gen_pad), jnp.float32),   # per-(gt-tile) column minima
        ),
        grid_spec=pltpu.PrefetchScalarGridSpec(
            num_scalar_prefetch=0,
            grid=(ni, nj),
            in_specs=[
                pl.BlockSpec((tm, k_pad), lambda i, j: (i, 0)),   # gt tile (fetched once per i)
                pl.BlockSpec((k_pad, tn), lambda i, j: (0, j)),   # homogeneous gen^T tile, streamed
            ],
            out_specs=[
                pl.BlockSpec((tm, 1), lambda i, j: (i, 0)),       # resident across j (row-min carry)
                pl.BlockSpec((1, 1, tn), lambda i, j: (i, 0, j)), # distinct per (i, j)
            ],
        ),
        compiler_params=pltpu.CompilerParams(
            dimension_semantics=("parallel", "arbitrary"),  # gt tiles independent; gen axis carries
            vmem_limit_bytes=vmem_limit,
        ),
    )(lhs, rhs)

    # Final combine in JAX: drop sentinel-padded entries, min over gt tiles, means, sum.
    gt_to_gen = jnp.sum(rowmin[:n_gt, 0]) / jnp.float32(n_gt)
    gen_to_gt = jnp.sum(jnp.min(colmin, axis=0)[0, :n_gen]) / jnp.float32(n_gen)
    return gt_to_gen + gen_to_gt


def _chamfer_reference(gt_points_l, gen_points_l):
    gt = jnp.squeeze(gt_points_l).astype(jnp.float32)
    gen = jnp.squeeze(gen_points_l).astype(jnp.float32)
    d2 = jnp.sum((gt[:, None, :] - gen[None, :, :]) ** 2, axis=-1)  # (N, M)
    return jnp.mean(jnp.min(d2, axis=1)) + jnp.mean(jnp.min(d2, axis=0))


if __name__ == "__main__":
    key = jax.random.PRNGKey(0)
    k1, k2, k3, k4 = jax.random.split(key, 4)

    # Aligned case, shaped like the module's inputs before .squeeze().
    gt_points_l = jax.random.normal(k1, (1, 256, 3), dtype=jnp.float32)
    gen_points_l = jax.random.normal(k2, (1, 256, 3), dtype=jnp.float32)
    out = jax.block_until_ready(chamfer_distance(gt_points_l, gen_points_l))
    ref = jax.block_until_ready(_chamfer_reference(gt_points_l, gen_points_l))
    assert jnp.allclose(out, ref, rtol=1e-4, atol=1e-4), (out, ref)

    # Ragged case: exercises the sentinel-padded tiling path (no in-kernel masks).
    gt2 = jax.random.normal(k3, (1, 300, 3), dtype=jnp.float32)
    gen2 = jax.random.normal(k4, (1, 200, 3), dtype=jnp.float32)
    out2 = jax.block_until_ready(chamfer_distance(gt2, gen2))
    ref2 = jax.block_until_ready(_chamfer_reference(gt2, gen2))
    assert jnp.allclose(out2, ref2, rtol=1e-4, atol=1e-4), (out2, ref2)

    print("KERNEL_OK")
</pallas_src>

<mosaic_0001>
module attributes {stable_mosaic.version = 11 : i64} {
  func.func @_chamfer_kernel(%arg0: i32, %arg1: i32, %arg2: memref<256x8xf32, #tpu.memory_space<vmem>>, %arg3: memref<8x256xf32, #tpu.memory_space<vmem>>, %arg4: memref<256x1xf32, #tpu.memory_space<vmem>>, %arg5: memref<1x1x256xf32, #tpu.memory_space<vmem>>) attributes {dimension_semantics = [#tpu.dimension_semantics<parallel>, #tpu.dimension_semantics<arbitrary>], iteration_bounds = array<i64: 1, 1>, scalar_prefetch = 0 : i64, scratch_operands = 0 : i64, tpu.core_type = #tpu.core_type<tc>, window_params = [{transform_indices = @transform_0, window_bounds = array<i64: 256, 8>}, {transform_indices = @transform_1, window_bounds = array<i64: 8, 256>}, {transform_indices = @transform_2, window_bounds = array<i64: 256, 1>}, {transform_indices = @transform_3, window_bounds = array<i64: 1, 1, 256>}]} {
    %c0 = arith.constant 0 : index
    %c0_0 = arith.constant 0 : index
    %0 = vector.load %arg2[%c0, %c0_0] : memref<256x8xf32, #tpu.memory_space<vmem>>, vector<256x8xf32>
    %c0_1 = arith.constant 0 : index
    %c0_2 = arith.constant 0 : index
    %1 = vector.load %arg3[%c0_1, %c0_2] : memref<8x256xf32, #tpu.memory_space<vmem>>, vector<8x256xf32>
    %cst = arith.constant dense<0.000000e+00> : vector<256x256xf32>
    %2 = tpu.matmul %0, %1, %cst {dimension_numbers = #tpu.dot_dimension_numbers<[1], [0], [0], [1], [0, 0, 1, 1], [], []>} : vector<256x8xf32>, vector<8x256xf32>, vector<256x256xf32> -> vector<256x256xf32>
    %cst_3 = arith.constant 0.000000e+00 : f32
    %3 = vector.broadcast %cst_3 : f32 to vector<256x256xf32>
    %4 = arith.maximumf %2, %3 : vector<256x256xf32>
    %cst_4 = arith.constant dense<0x7F800000> : vector<256xf32>
    %5 = vector.multi_reduction <minimumf>, %4, %cst_4 [1] : vector<256x256xf32> to vector<256xf32>
    %6 = vector.shape_cast %5 : vector<256xf32> to vector<256x1xf32>
    %c0_i32 = arith.constant 0 : i32
    %7 = arith.cmpi eq, %arg1, %c0_i32 : i32
    %c0_5 = arith.constant 0 : index
    %c0_6 = arith.constant 0 : index
    %8 = vector.load %arg4[%c0_5, %c0_6] : memref<256x1xf32, #tpu.memory_space<vmem>>, vector<256x1xf32>
    %cst_7 = arith.constant 0x7F800000 : f32
    %9 = vector.broadcast %cst_7 : f32 to vector<256x1xf32>
    %10 = arith.select %7, %9, %8 : vector<256x1xf32>
    %11 = arith.minimumf %10, %6 : vector<256x1xf32>
    %c0_8 = arith.constant 0 : index
    %c0_9 = arith.constant 0 : index
    %12 = vector.load %arg4[%c0_8, %c0_9] : memref<256x1xf32, #tpu.memory_space<vmem>>, vector<256x1xf32>
    tpu.vector_store %arg4[%c0_8, %c0_9], %11 {strides = array<i32>} : memref<256x1xf32, #tpu.memory_space<vmem>>, vector<256x1xf32>,
    %cst_10 = arith.constant dense<0x7F800000> : vector<256xf32>
    %13 = vector.multi_reduction <minimumf>, %4, %cst_10 [0] : vector<256x256xf32> to vector<256xf32>
    %14 = vector.shape_cast %13 : vector<256xf32> to vector<1x256xf32>
    %15 = vector.shape_cast %14 : vector<1x256xf32> to vector<1x1x256xf32>
    %c0_11 = arith.constant 0 : index
    %c0_12 = arith.constant 0 : index
    %c0_13 = arith.constant 0 : index
    %16 = vector.load %arg5[%c0_11, %c0_12, %c0_13] : memref<1x1x256xf32, #tpu.memory_space<vmem>>, vector<1x1x256xf32>
    tpu.vector_store %arg5[%c0_11, %c0_12, %c0_13], %15 {strides = array<i32>} : memref<1x1x256xf32, #tpu.memory_space<vmem>>, vector<1x1x256xf32>,
    return
  }
  func.func @transform_0(%arg0: i32, %arg1: i32) -> (i32, i32) {
    %c0_i32 = arith.constant 0 : i32
    %c0_i32_0 = arith.constant 0 : i32
    return %arg0, %c0_i32 : i32, i32
  }
  func.func @transform_1(%arg0: i32, %arg1: i32) -> (i32, i32) {
    %c0_i32 = arith.constant 0 : i32
    %c0_i32_0 = arith.constant 0 : i32
    return %c0_i32, %arg1 : i32, i32
  }
  func.func @transform_2(%arg0: i32, %arg1: i32) -> (i32, i32) {
    %c0_i32 = arith.constant 0 : i32
    %c0_i32_0 = arith.constant 0 : i32
    return %arg0, %c0_i32 : i32, i32
  }
  func.func @transform_3(%arg0: i32, %arg1: i32) -> (i32, i32, i32) {
    %c0_i32 = arith.constant 0 : i32
    %c0_i32_0 = arith.constant 0 : i32
    return %arg0, %c0_i32, %arg1 : i32, i32, i32
  }
}

</mosaic_0001>

<llo_original>
// kernel: tpu_custom_call.1
$region0: #{tpu_custom_call.1}
  #allocation0 [shape = 'u32[]', space=smem, size = 0x4, offset = 0x4, fixed_abs, tag = 'smem constant byte address 0x4 - core index']
  #allocation1 [shape = 'u32[144,128]{1,0:T(1,128)}', space=vmem, size = 0x12000, scoped, tag = 'internal scratch']
  %s0 = inlined_call_operand.vmem [shape: f32[256,8], index: 0, kind: input, shape index: {}]
  %s1 = inlined_call_operand.vmem [shape: f32[8,256], index: 1, kind: input, shape index: {}]
  %s2 = inlined_call_operand.vmem [shape: f32[256,1], index: 2, kind: output, shape index: {0}]
  %s3 = inlined_call_operand.hbm [shape: f32[1,1,256], index: 3, kind: output, shape index: {1}]
  %4 = xla_tuple %s2, %s3
  %s5 = sld [smem:[#allocation0]]
  $region26: #{tpu_custom_call.1} parent=0
    _
  %s7 = ssub.s32 1, %s5
  %s8 = scalar_select 0, %s7, %s5
  $region1: #{tpu_custom_call.1} parent=0
    #allocation2 [shape = 'u8[1024]{0}', space=vmem, size = 0x400, scoped, tag = 'output window, operand 1, single buffered']
    #allocation3 [shape = 's32[1]{0}', space=sflag, size = 0x4, scoped, tag = 'scoped memory for tpu_custom_call.1']
    %9 = vsyncpa [#allocation3], 0
    // Predicated region
    $region2: #{tpu_custom_call.1} parent=1 // pred_check
      _
    $region3: #{tpu_custom_call.1} parent=1 // pred_check_branch
      %11 = sbr.rel (0) target = $region5
    $region4: #{tpu_custom_call.1} parent=1 // pred_region
      _
    $region5: #{tpu_custom_call.1} parent=1 // pred_fallthru
      _
    // Predicated region
    $region6: #{tpu_custom_call.1} parent=1 // pred_check
      _
    $region7: #{tpu_custom_call.1} parent=1 // pred_check_branch
      %13 = sbr.rel (0) target = $region9
    $region8: #{tpu_custom_call.1} parent=1 // pred_region
      _
    $region9: #{tpu_custom_call.1} parent=1 // pred_fallthru
      _
    %v14 = vld [vmem:[%s0] sm:$0xff]
    %v15 = vld [vmem:[%s0 + $0x8] sm:$0xff]
    %v16 = vld [vmem:[%s0 + $0x10] sm:$0xff]
    %v17 = vld [vmem:[%s0 + $0x18] sm:$0xff]
    %v18 = vld [vmem:[%s0 + $0x20] sm:$0xff]
    %v19 = vld [vmem:[%s0 + $0x28] sm:$0xff]
    %v20 = vld [vmem:[%s0 + $0x30] sm:$0xff]
    %v21 = vld [vmem:[%s0 + $0x38] sm:$0xff]
    %v22 = vld [vmem:[%s0 + $0x40] sm:$0xff]
    %v23 = vld [vmem:[%s0 + $0x48] sm:$0xff]
    %v24 = vld [vmem:[%s0 + $0x50] sm:$0xff]
    %v25 = vld [vmem:[%s0 + $0x58] sm:$0xff]
    %v26 = vld [vmem:[%s0 + $0x60] sm:$0xff]
    %v27 = vld [vmem:[%s0 + $0x68] sm:$0xff]
    %v28 = vld [vmem:[%s0 + $0x70] sm:$0xff]
    %v29 = vld [vmem:[%s0 + $0x78] sm:$0xff]
    %v30 = vld [vmem:[%s0 + $0x80] sm:$0xff]
    %v31 = vld [vmem:[%s0 + $0x88] sm:$0xff]
    %v32 = vld [vmem:[%s0 + $0x90] sm:$0xff]
    %v33 = vld [vmem:[%s0 + $0x98] sm:$0xff]
    %v34 = vld [vmem:[%s0 + $0xa0] sm:$0xff]
    %v35 = vld [vmem:[%s0 + $0xa8] sm:$0xff]
    %v36 = vld [vmem:[%s0 + $0xb0] sm:$0xff]
    %v37 = vld [vmem:[%s0 + $0xb8] sm:$0xff]
    %v38 = vld [vmem:[%s0 + $0xc0] sm:$0xff]
    %v39 = vld [vmem:[%s0 + $0xc8] sm:$0xff]
    %v40 = vld [vmem:[%s0 + $0xd0] sm:$0xff]
    %v41 = vld [vmem:[%s0 + $0xd8] sm:$0xff]
    %v42 = vld [vmem:[%s0 + $0xe0] sm:$0xff]
    %v43 = vld [vmem:[%s0 + $0xe8] sm:$0xff]
    %v44 = vld [vmem:[%s0 + $0xf0] sm:$0xff]
    %v45 = vld [vmem:[%s0 + $0xf8] sm:$0xff]
    %v46 = vld [vmem:[%s1] sm:$0xff]
    %v47 = vld [vmem:[%s1 + $0x8] sm:$0xff]
    %vm48 = vcmask 64512
    %v50 = vsel %vm48, %v14, 0
    %v53 = vsel %vm48, %v15, 0
    %v56 = vsel %vm48, %v16, 0
    %v59 = vsel %vm48, %v17, 0
    %v62 = vsel %vm48, %v18, 0
    %v65 = vsel %vm48, %v19, 0
    %v68 = vsel %vm48, %v20, 0
    %v71 = vsel %vm48, %v21, 0
    %v74 = vsel %vm48, %v22, 0
    %v77 = vsel %vm48, %v23, 0
    %v80 = vsel %vm48, %v24, 0
    %v83 = vsel %vm48, %v25, 0
    %v86 = vsel %vm48, %v26, 0
    %v89 = vsel %vm48, %v27, 0
    %v92 = vsel %vm48, %v28, 0
    %v95 = vsel %vm48, %v29, 0
    %v98 = vsel %vm48, %v30, 0
    %v101 = vsel %vm48, %v31, 0
    %v104 = vsel %vm48, %v32, 0
    %v107 = vsel %vm48, %v33, 0
    %v110 = vsel %vm48, %v34, 0
    %v113 = vsel %vm48, %v35, 0
    %v116 = vsel %vm48, %v36, 0
    %v119 = vsel %vm48, %v37, 0
    %v122 = vsel %vm48, %v38, 0
    %v125 = vsel %vm48, %v39, 0
    %v128 = vsel %vm48, %v40, 0
    %v131 = vsel %vm48, %v41, 0
    %v134 = vsel %vm48, %v42, 0
    %v137 = vsel %vm48, %v43, 0
    %v140 = vsel %vm48, %v44, 0
    %v143 = vsel %vm48, %v45, 0
    %145 = vmatprep.subr.mxu0 %v47
    %146 = vmatpush1.msra.mxu0 %v46
    %147 = vmatprep.subr.mxu0 0.0
    %148 = vmatpush1.msra.mxu0 0.0
    %149 = vmatprep.subr.mxu0 0.0
    %150 = vmatpush1.msra.mxu0 0.0
    %151 = vmatprep.subr.mxu0 0.0
    %152 = vmatpush1.msra.mxu0 0.0
    %153 = vmatprep.subr.mxu0 0.0
    %154 = vmatpush1.msra.mxu0 0.0
    %155 = vmatprep.subr.mxu0 0.0
    %156 = vmatpush1.msra.mxu0 0.0
    %157 = vmatprep.subr.mxu0 0.0
    %158 = vmatpush1.msra.mxu0 0.0
    %159 = vmatprep.subr.mxu0 0.0
    %160 = vmatpush1.msra.mxu0 0.0
    %161 = vmatprep.subr.mxu0 0.0
    %162 = vmatpush1.msra.mxu0 0.0
    %163 = vmatprep.subr.mxu0 0.0
    %164 = vmatpush1.msra.mxu0 0.0
    %165 = vmatprep.subr.mxu0 0.0
    %166 = vmatpush1.msra.mxu0 0.0
    %167 = vmatprep.subr.mxu0 0.0
    %168 = vmatpush1.msra.mxu0 0.0
    %169 = vmatprep.subr.mxu0 0.0
    %170 = vmatpush1.msra.mxu0 0.0
    %171 = vmatprep.subr.mxu0 0.0
    %172 = vmatpush1.msra.mxu0 0.0
    %173 = vmatprep.subr.mxu0 0.0
    %174 = vmatpush1.msra.mxu0 0.0
    %175 = vmatprep.subr.mxu0 0.0
    %176 = vmatpush1.msra.mxu0 0.0
    %177 = vmatprep.subr.mxu0 0.0
    %178 = vmatpush1.msra.mxu0 0.0
    %179 = vmatprep.subr.mxu0 0.0
    %180 = vmatpush1.msra.mxu0 0.0
    %181 = vmatprep.subr.mxu0 0.0
    %182 = vmatpush1.msra.mxu0 0.0
    %183 = vmatprep.subr.mxu0 0.0
    %184 = vmatpush1.msra.mxu0 0.0
    %185 = vmatprep.subr.mxu0 0.0
    %186 = vmatpush1.msra.mxu0 0.0
    %187 = vmatprep.subr.mxu0 0.0
    %188 = vmatpush1.msra.mxu0 0.0
    %189 = vmatprep.subr.mxu0 0.0
    %190 = vmatpush1.msra.mxu0 0.0
    %191 = vmatprep.subr.mxu0 0.0
    %192 = vmatpush1.msra.mxu0 0.0
    %193 = vmatprep.subr.mxu0 0.0
    %194 = vmatpush1.msra.mxu0 0.0
    %195 = vmatprep.subr.mxu0 0.0
    %196 = vmatpush1.msra.mxu0 0.0
    %197 = vmatprep.subr.mxu0 0.0
    %198 = vmatpush1.msra.mxu0 0.0
    %199 = vmatprep.subr.mxu0 0.0
    %200 = vmatpush1.msra.mxu0 0.0
    %201 = vmatprep.subr.mxu0 0.0
    %202 = vmatpush1.msra.mxu0 0.0
    %203 = vmatprep.subr.mxu0 0.0
    %204 = vmatpush1.msra.mxu0 0.0
    %205 = vmatprep.subr.mxu0 0.0
    %206 = vmatpush1.msra.mxu0 0.0
    %207 = vmatprep.subr.mxu0 0.0
    %208 = vmatpush1.msra.mxu0 0.0
    %209 = vmatprep.mubr.f32.mxu0 0.0
    %210 = vmatmul.mubr.f32.gmra.mrb[0].mxu0 %v50
    %v211 = vpop.f32.mrb[0].mxu0
    %v212 = vadd.f32 0.0, %v211
    %v213 = vpop.f32.mrb[0].mxu0
    %v214 = vadd.f32 0.0, %v213
    %215 = vmatprep.mubr.f32.mxu0 0.0
    %216 = vmatmul.mubr.f32.gmra.mrb[0].mxu0 %v53
    %v217 = vpop.f32.mrb[0].mxu0
    %v218 = vadd.f32 0.0, %v217
    %v219 = vpop.f32.mrb[0].mxu0
    %v220 = vadd.f32 0.0, %v219
    %221 = vmatprep.mubr.f32.mxu0 0.0
    %222 = vmatmul.mubr.f32.gmra.mrb[0].mxu0 %v56
    %v223 = vpop.f32.mrb[0].mxu0
    %v224 = vadd.f32 0.0, %v223
    %v225 = vpop.f32.mrb[0].mxu0
    %v226 = vadd.f32 0.0, %v225
    %227 = vmatprep.mubr.f32.mxu0 0.0
    %228 = vmatmul.mubr.f32.gmra.mrb[0].mxu0 %v59
    %v229 = vpop.f32.mrb[0].mxu0
    %v230 = vadd.f32 0.0, %v229
    %v231 = vpop.f32.mrb[0].mxu0
    %v232 = vadd.f32 0.0, %v231
    %233 = vmatprep.mubr.f32.mxu0 0.0
    %234 = vmatmul.mubr.f32.gmra.mrb[0].mxu0 %v62
    %v235 = vpop.f32.mrb[0].mxu0
    %v236 = vadd.f32 0.0, %v235
    %v237 = vpop.f32.mrb[0].mxu0
    %v238 = vadd.f32 0.0, %v237
    %239 = vmatprep.mubr.f32.mxu0 0.0
    %240 = vmatmul.mubr.f32.gmra.mrb[0].mxu0 %v65
    %v241 = vpop.f32.mrb[0].mxu0
    %v242 = vadd.f32 0.0, %v241
    %v243 = vpop.f32.mrb[0].mxu0
    %v244 = vadd.f32 0.0, %v243
    %245 = vmatprep.mubr.f32.mxu0 0.0
    %246 = vmatmul.mubr.f32.gmra.mrb[0].mxu0 %v68
    %v247 = vpop.f32.mrb[0].mxu0
    %v248 = vadd.f32 0.0, %v247
    %v249 = vpop.f32.mrb[0].mxu0
    %v250 = vadd.f32 0.0, %v249
    %251 = vmatprep.mubr.f32.mxu0 0.0
    %252 = vmatmul.mubr.f32.gmra.mrb[0].mxu0 %v71
    %v253 = vpop.f32.mrb[0].mxu0
    %v254 = vadd.f32 0.0, %v253
    %v255 = vpop.f32.mrb[0].mxu0
    %v256 = vadd.f32 0.0, %v255
    %257 = vmatprep.mubr.f32.mxu0 0.0
    %258 = vmatmul.mubr.f32.gmra.mrb[0].mxu0 %v74
    %v259 = vpop.f32.mrb[0].mxu0
    %v260 = vadd.f32 0.0, %v259
    %v261 = vpop.f32.mrb[0].mxu0
    %v262 = vadd.f32 0.0, %v261
    %263 = vmatprep.mubr.f32.mxu0 0.0
    %264 = vmatmul.mubr.f32.gmra.mrb[0].mxu0 %v77
    %v265 = vpop.f32.mrb[0].mxu0
    %v266 = vadd.f32 0.0, %v265
    %v267 = vpop.f32.mrb[0].mxu0
    %v268 = vadd.f32 0.0, %v267
    %269 = vmatprep.mubr.f32.mxu0 0.0
    %270 = vmatmul.mubr.f32.gmra.mrb[0].mxu0 %v80
    %v271 = vpop.f32.mrb[0].mxu0
    %v272 = vadd.f32 0.0, %v271
    %v273 = vpop.f32.mrb[0].mxu0
    %v274 = vadd.f32 0.0, %v273
    %275 = vmatprep.mubr.f32.mxu0 0.0
    %276 = vmatmul.mubr.f32.gmra.mrb[0].mxu0 %v83
    %v277 = vpop.f32.mrb[0].mxu0
    %v278 = vadd.f32 0.0, %v277
    %v279 = vpop.f32.mrb[0].mxu0
    %v280 = vadd.f32 0.0, %v279
    %281 = vmatprep.mubr.f32.mxu0 0.0
    %282 = vmatmul.mubr.f32.gmra.mrb[0].mxu0 %v86
    %v283 = vpop.f32.mrb[0].mxu0
    %v284 = vadd.f32 0.0, %v283
    %v285 = vpop.f32.mrb[0].mxu0
    %v286 = vadd.f32 0.0, %v285
    %287 = vmatprep.mubr.f32.mxu0 0.0
    %288 = vmatmul.mubr.f32.gmra.mrb[0].mxu0 %v89
    %v289 = vpop.f32.mrb[0].mxu0
    %v290 = vadd.f32 0.0, %v289
    %v291 = vpop.f32.mrb[0].mxu0
    %v292 = vadd.f32 0.0, %v291
    %293 = vmatprep.mubr.f32.mxu0 0.0
    %294 = vmatmul.mubr.f32.gmra.mrb[0].mxu0 %v92
    %v295 = vpop.f32.mrb[0].mxu0
    %v296 = vadd.f32 0.0, %v295
    %v297 = vpop.f32.mrb[0].mxu0
    %v298 = vadd.f32 0.0, %v297
    %299 = vmatprep.mubr.f32.mxu0 0.0
    %300 = vmatmul.mubr.f32.gmra.mrb[0].mxu0 %v95
    %v301 = vpop.f32.mrb[0].mxu0
    %v302 = vadd.f32 0.0, %v301
    %v303 = vpop.f32.mrb[0].mxu0
    %v304 = vadd.f32 0.0, %v303
    %305 = vmatprep.mubr.f32.mxu0 0.0
    %306 = vmatmul.mubr.f32.gmra.mrb[0].mxu0 %v98
    %v307 = vpop.f32.mrb[0].mxu0
    %v308 = vadd.f32 0.0, %v307
    %v309 = vpop.f32.mrb[0].mxu0
    %v310 = vadd.f32 0.0, %v309
    %311 = vmatprep.mubr.f32.mxu0 0.0
    %312 = vmatmul.mubr.f32.gmra.mrb[0].mxu0 %v101
    %v313 = vpop.f32.mrb[0].mxu0
    %v314 = vadd.f32 0.0, %v313
    %v315 = vpop.f32.mrb[0].mxu0
    %v316 = vadd.f32 0.0, %v315
    %317 = vmatprep.mubr.f32.mxu0 0.0
    %318 = vmatmul.mubr.f32.gmra.mrb[0].mxu0 %v104
    %v319 = vpop.f32.mrb[0].mxu0
    %v320 = vadd.f32 0.0, %v319
    %v321 = vpop.f32.mrb[0].mxu0
    %v322 = vadd.f32 0.0, %v321
    %323 = vmatprep.mubr.f32.mxu0 0.0
    %324 = vmatmul.mubr.f32.gmra.mrb[0].mxu0 %v107
    %v325 = vpop.f32.mrb[0].mxu0
    %v326 = vadd.f32 0.0, %v325
    %v327 = vpop.f32.mrb[0].mxu0
    %v328 = vadd.f32 0.0, %v327
    %329 = vmatprep.mubr.f32.mxu0 0.0
    %330 = vmatmul.mubr.f32.gmra.mrb[0].mxu0 %v110
    %v331 = vpop.f32.mrb[0].mxu0
    %v332 = vadd.f32 0.0, %v331
    %v333 = vpop.f32.mrb[0].mxu0
    %v334 = vadd.f32 0.0, %v333
    %335 = vmatprep.mubr.f32.mxu0 0.0
    %336 = vmatmul.mubr.f32.gmra.mrb[0].mxu0 %v113
    %v337 = vpop.f32.mrb[0].mxu0
    %v338 = vadd.f32 0.0, %v337
    %v339 = vpop.f32.mrb[0].mxu0
    %v340 = vadd.f32 0.0, %v339
    %341 = vmatprep.mubr.f32.mxu0 0.0
    %342 = vmatmul.mubr.f32.gmra.mrb[0].mxu0 %v116
    %v343 = vpop.f32.mrb[0].mxu0
    %v344 = vadd.f32 0.0, %v343
    %v345 = vpop.f32.mrb[0].mxu0
    %v346 = vadd.f32 0.0, %v345
    %347 = vmatprep.mubr.f32.mxu0 0.0
    %348 = vmatmul.mubr.f32.gmra.mrb[0].mxu0 %v119
    %v349 = vpop.f32.mrb[0].mxu0
    %v350 = vadd.f32 0.0, %v349
    %v351 = vpop.f32.mrb[0].mxu0
    %v352 = vadd.f32 0.0, %v351
    %353 = vmatprep.mubr.f32.mxu0 0.0
    %354 = vmatmul.mubr.f32.gmra.mrb[0].mxu0 %v122
    %v355 = vpop.f32.mrb[0].mxu0
    %v356 = vadd.f32 0.0, %v355
    %v357 = vpop.f32.mrb[0].mxu0
    %v358 = vadd.f32 0.0, %v357
    %359 = vmatprep.mubr.f32.mxu0 0.0
    %360 = vmatmul.mubr.f32.gmra.mrb[0].mxu0 %v125
    %v361 = vpop.f32.mrb[0].mxu0
    %v362 = vadd.f32 0.0, %v361
    %v363 = vpop.f32.mrb[0].mxu0
    %v364 = vadd.f32 0.0, %v363
    %365 = vmatprep.mubr.f32.mxu0 0.0
    %366 = vmatmul.mubr.f32.gmra.mrb[0].mxu0 %v128
    %v367 = vpop.f32.mrb[0].mxu0
    %v368 = vadd.f32 0.0, %v367
    %v369 = vpop.f32.mrb[0].mxu0
    %v370 = vadd.f32 0.0, %v369
    %371 = vmatprep.mubr.f32.mxu0 0.0
    %372 = vmatmul.mubr.f32.gmra.mrb[0].mxu0 %v131
    %v373 = vpop.f32.mrb[0].mxu0
    %v374 = vadd.f32 0.0, %v373
    %v375 = vpop.f32.mrb[0].mxu0
    %v376 = vadd.f32 0.0, %v375
    %377 = vmatprep.mubr.f32.mxu0 0.0
    %378 = vmatmul.mubr.f32.gmra.mrb[0].mxu0 %v134
    %v379 = vpop.f32.mrb[0].mxu0
    %v380 = vadd.f32 0.0, %v379
    %v381 = vpop.f32.mrb[0].mxu0
    %v382 = vadd.f32 0.0, %v381
    %383 = vmatprep.mubr.f32.mxu0 0.0
    %384 = vmatmul.mubr.f32.gmra.mrb[0].mxu0 %v137
    %v385 = vpop.f32.mrb[0].mxu0
    %v386 = vadd.f32 0.0, %v385
    %v387 = vpop.f32.mrb[0].mxu0
    %v388 = vadd.f32 0.0, %v387
    %389 = vmatprep.mubr.f32.mxu0 0.0
    %390 = vmatmul.mubr.f32.gmra.mrb[0].mxu0 %v140
    %v391 = vpop.f32.mrb[0].mxu0
    %v392 = vadd.f32 0.0, %v391
    %v393 = vpop.f32.mrb[0].mxu0
    %v394 = vadd.f32 0.0, %v393
    %395 = vmatprep.mubr.f32.mxu0 0.0
    %396 = vmatmul.mubr.f32.gmra.mrb[0].mxu0 %v143
    %v397 = vpop.f32.mrb[0].mxu0
    %v398 = vadd.f32 0.0, %v397
    %v399 = vpop.f32.mrb[0].mxu0
    %v400 = vadd.f32 0.0, %v399
    %401 = vdwg.mxu0
    %v402 = vmax.f32 %v212, 0.0
    %v403 = vmax.f32 %v214, 0.0
    %v404 = vmax.f32 %v218, 0.0
    %v405 = vmax.f32 %v220, 0.0
    %v406 = vmax.f32 %v224, 0.0
    %v407 = vmax.f32 %v226, 0.0
    %v408 = vmax.f32 %v230, 0.0
    %v409 = vmax.f32 %v232, 0.0
    %v410 = vmax.f32 %v236, 0.0
    %v411 = vmax.f32 %v238, 0.0
    %v412 = vmax.f32 %v242, 0.0
    %v413 = vmax.f32 %v244, 0.0
    %v414 = vmax.f32 %v248, 0.0
    %v415 = vmax.f32 %v250, 0.0
    %v416 = vmax.f32 %v254, 0.0
    %v417 = vmax.f32 %v256, 0.0
    %v418 = vmax.f32 %v260, 0.0
    %v419 = vmax.f32 %v262, 0.0
    %v420 = vmax.f32 %v266, 0.0
    %v421 = vmax.f32 %v268, 0.0
    %v422 = vmax.f32 %v272, 0.0
    %v423 = vmax.f32 %v274, 0.0
    %v424 = vmax.f32 %v278, 0.0
    %v425 = vmax.f32 %v280, 0.0
    %v426 = vmax.f32 %v284, 0.0
    %v427 = vmax.f32 %v286, 0.0
    %v428 = vmax.f32 %v290, 0.0
    %v429 = vmax.f32 %v292, 0.0
    %v430 = vmax.f32 %v296, 0.0
    %v431 = vmax.f32 %v298, 0.0
    %v432 = vmax.f32 %v302, 0.0
    %v433 = vmax.f32 %v304, 0.0
    %v434 = vmax.f32 %v308, 0.0
    %v435 = vmax.f32 %v310, 0.0
    %v436 = vmax.f32 %v314, 0.0
    %v437 = vmax.f32 %v316, 0.0
    %v438 = vmax.f32 %v320, 0.0
    %v439 = vmax.f32 %v322, 0.0
    %v440 = vmax.f32 %v326, 0.0
    %v441 = vmax.f32 %v328, 0.0
    %v442 = vmax.f32 %v332, 0.0
    %v443 = vmax.f32 %v334, 0.0
    %v444 = vmax.f32 %v338, 0.0
    %v445 = vmax.f32 %v340, 0.0
    %v446 = vmax.f32 %v344, 0.0
    %v447 = vmax.f32 %v346, 0.0
    %v448 = vmax.f32 %v350, 0.0
    %v449 = vmax.f32 %v352, 0.0
    %v450 = vmax.f32 %v356, 0.0
    %v451 = vmax.f32 %v358, 0.0
    %v452 = vmax.f32 %v362, 0.0
    %v453 = vmax.f32 %v364, 0.0
    %v454 = vmax.f32 %v368, 0.0
    %v455 = vmax.f32 %v370, 0.0
    %v456 = vmax.f32 %v374, 0.0
    %v457 = vmax.f32 %v376, 0.0
    %v458 = vmax.f32 %v380, 0.0
    %v459 = vmax.f32 %v382, 0.0
    %v460 = vmax.f32 %v386, 0.0
    %v461 = vmax.f32 %v388, 0.0
    %v462 = vmax.f32 %v392, 0.0
    %v463 = vmax.f32 %v394, 0.0
    %v464 = vmax.f32 %v398, 0.0
    %v465 = vmax.f32 %v400, 0.0
    %v466 = vmin.f32 %v402, %v403
    %467 = vmin.xlane.f32.xlu0 %v466
    %v468 = vpop.xlane.xlu0 %467
    %v469 = vmin.f32 %v404, %v405
    %470 = vmin.xlane.f32.xlu0 %v469
    %v471 = vpop.xlane.xlu0 %470
    %v472 = vmin.f32 %v406, %v407
    %473 = vmin.xlane.f32.xlu0 %v472
    %v474 = vpop.xlane.xlu0 %473
    %v475 = vmin.f32 %v408, %v409
    %476 = vmin.xlane.f32.xlu0 %v475
    %v477 = vpop.xlane.xlu0 %476
    %v478 = vmin.f32 %v410, %v411
    %479 = vmin.xlane.f32.xlu0 %v478
    %v480 = vpop.xlane.xlu0 %479
    %v481 = vmin.f32 %v412, %v413
    %482 = vmin.xlane.f32.xlu0 %v481
    %v483 = vpop.xlane.xlu0 %482
    %v484 = vmin.f32 %v414, %v415
    %485 = vmin.xlane.f32.xlu0 %v484
    %v486 = vpop.xlane.xlu0 %485
    %v487 = vmin.f32 %v416, %v417
    %488 = vmin.xlane.f32.xlu0 %v487
    %v489 = vpop.xlane.xlu0 %488
    %v490 = vmin.f32 %v418, %v419
    %491 = vmin.xlane.f32.xlu0 %v490
    %v492 = vpop.xlane.xlu0 %491
    %v493 = vmin.f32 %v420, %v421
    %494 = vmin.xlane.f32.xlu0 %v493
    %v495 = vpop.xlane.xlu0 %494
    %v496 = vmin.f32 %v422, %v423
    %497 = vmin.xlane.f32.xlu0 %v496
    %v498 = vpop.xlane.xlu0 %497
    %v499 = vmin.f32 %v424, %v425
    %500 = vmin.xlane.f32.xlu0 %v499
    %v501 = vpop.xlane.xlu0 %500
    %v502 = vmin.f32 %v426, %v427
    %503 = vmin.xlane.f32.xlu0 %v502
    %v504 = vpop.xlane.xlu0 %503
    %v505 = vmin.f32 %v428, %v429
    %506 = vmin.xlane.f32.xlu0 %v505
    %v507 = vpop.xlane.xlu0 %506
    %v508 = vmin.f32 %v430, %v431
    %509 = vmin.xlane.f32.xlu0 %v508
    %v510 = vpop.xlane.xlu0 %509
    %v511 = vmin.f32 %v432, %v433
    %512 = vmin.xlane.f32.xlu0 %v511
    %v513 = vpop.xlane.xlu0 %512
    %v514 = vmin.f32 %v434, %v435
    %515 = vmin.xlane.f32.xlu0 %v514
    %v516 = vpop.xlane.xlu0 %515
    %v517 = vmin.f32 %v436, %v437
    %518 = vmin.xlane.f32.xlu0 %v517
    %v519 = vpop.xlane.xlu0 %518
    %v520 = vmin.f32 %v438, %v439
    %521 = vmin.xlane.f32.xlu0 %v520
    %v522 = vpop.xlane.xlu0 %521
    %v523 = vmin.f32 %v440, %v441
    %524 = vmin.xlane.f32.xlu0 %v523
    %v525 = vpop.xlane.xlu0 %524
    %v526 = vmin.f32 %v442, %v443
    %527 = vmin.xlane.f32.xlu0 %v526
    %v528 = vpop.xlane.xlu0 %527
    %v529 = vmin.f32 %v444, %v445
    %530 = vmin.xlane.f32.xlu0 %v529
    %v531 = vpop.xlane.xlu0 %530
    %v532 = vmin.f32 %v446, %v447
    %533 = vmin.xlane.f32.xlu0 %v532
    %v534 = vpop.xlane.xlu0 %533
    %v535 = vmin.f32 %v448, %v449
    %536 = vmin.xlane.f32.xlu0 %v535
    %v537 = vpop.xlane.xlu0 %536
    %v538 = vmin.f32 %v450, %v451
    %539 = vmin.xlane.f32.xlu0 %v538
    %v540 = vpop.xlane.xlu0 %539
    %v541 = vmin.f32 %v452, %v453
    %542 = vmin.xlane.f32.xlu0 %v541
    %v543 = vpop.xlane.xlu0 %542
    %v544 = vmin.f32 %v454, %v455
    %545 = vmin.xlane.f32.xlu0 %v544
    %v546 = vpop.xlane.xlu0 %545
    %v547 = vmin.f32 %v456, %v457
    %548 = vmin.xlane.f32.xlu0 %v547
    %v549 = vpop.xlane.xlu0 %548
    %v550 = vmin.f32 %v458, %v459
    %551 = vmin.xlane.f32.xlu0 %v550
    %v552 = vpop.xlane.xlu0 %551
    %v553 = vmin.f32 %v460, %v461
    %554 = vmin.xlane.f32.xlu0 %v553
    %v555 = vpop.xlane.xlu0 %554
    %v556 = vmin.f32 %v462, %v463
    %557 = vmin.xlane.f32.xlu0 %v556
    %v558 = vpop.xlane.xlu0 %557
    %v559 = vmin.f32 %v464, %v465
    %560 = vmin.xlane.f32.xlu0 %v559
    %v561 = vpop.xlane.xlu0 %560
    %p562 = scmp.eq.s32.totalorder 0, 0
    %v563 = vld [vmem:[%s2] sm:$0xff]
    %v564 = vld [vmem:[%s2 + $0x8] sm:$0xff]
    %v565 = vld [vmem:[%s2 + $0x10] sm:$0xff]
    %v566 = vld [vmem:[%s2 + $0x18] sm:$0xff]
    %v567 = vld [vmem:[%s2 + $0x20] sm:$0xff]
    %v568 = vld [vmem:[%s2 + $0x28] sm:$0xff]
    %v569 = vld [vmem:[%s2 + $0x30] sm:$0xff]
    %v570 = vld [vmem:[%s2 + $0x38] sm:$0xff]
    %v571 = vld [vmem:[%s2 + $0x40] sm:$0xff]
    %v572 = vld [vmem:[%s2 + $0x48] sm:$0xff]
    %v573 = vld [vmem:[%s2 + $0x50] sm:$0xff]
    %v574 = vld [vmem:[%s2 + $0x58] sm:$0xff]
    %v575 = vld [vmem:[%s2 + $0x60] sm:$0xff]
    %v576 = vld [vmem:[%s2 + $0x68] sm:$0xff]
    %v577 = vld [vmem:[%s2 + $0x70] sm:$0xff]
    %v578 = vld [vmem:[%s2 + $0x78] sm:$0xff]
    %v579 = vld [vmem:[%s2 + $0x80] sm:$0xff]
    %v580 = vld [vmem:[%s2 + $0x88] sm:$0xff]
    %v581 = vld [vmem:[%s2 + $0x90] sm:$0xff]
    %v582 = vld [vmem:[%s2 + $0x98] sm:$0xff]
    %v583 = vld [vmem:[%s2 + $0xa0] sm:$0xff]
    %v584 = vld [vmem:[%s2 + $0xa8] sm:$0xff]
    %v585 = vld [vmem:[%s2 + $0xb0] sm:$0xff]
    %v586 = vld [vmem:[%s2 + $0xb8] sm:$0xff]
    %v587 = vld [vmem:[%s2 + $0xc0] sm:$0xff]
    %v588 = vld [vmem:[%s2 + $0xc8] sm:$0xff]
    %v589 = vld [vmem:[%s2 + $0xd0] sm:$0xff]
    %v590 = vld [vmem:[%s2 + $0xd8] sm:$0xff]
    %v591 = vld [vmem:[%s2 + $0xe0] sm:$0xff]
    %v592 = vld [vmem:[%s2 + $0xe8] sm:$0xff]
    %v593 = vld [vmem:[%s2 + $0xf0] sm:$0xff]
    %v594 = vld [vmem:[%s2 + $0xf8] sm:$0xff]
    %s595 = scalar_select %p562, 1, 0
    %v596 = vstv %s595
    %vm597 = vcmp.eq.s32.totalorder %v596, 1
    %v598 = vsel %vm597, inf, %v563
    %v599 = vsel %vm597, inf, %v564
    %v600 = vsel %vm597, inf, %v565
    %v601 = vsel %vm597, inf, %v566
    %v602 = vsel %vm597, inf, %v567
    %v603 = vsel %vm597, inf, %v568
    %v604 = vsel %vm597, inf, %v569
    %v605 = vsel %vm597, inf, %v570
    %v606 = vsel %vm597, inf, %v571
    %v607 = vsel %vm597, inf, %v572
    %v608 = vsel %vm597, inf, %v573
    %v609 = vsel %vm597, inf, %v574
    %v610 = vsel %vm597, inf, %v575
    %v611 = vsel %vm597, inf, %v576
    %v612 = vsel %vm597, inf, %v577
    %v613 = vsel %vm597, inf, %v578
    %v614 = vsel %vm597, inf, %v579
    %v615 = vsel %vm597, inf, %v580
    %v616 = vsel %vm597, inf, %v581
    %v617 = vsel %vm597, inf, %v582
    %v618 = vsel %vm597, inf, %v583
    %v619 = vsel %vm597, inf, %v584
    %v620 = vsel %vm597, inf, %v585
    %v621 = vsel %vm597, inf, %v586
    %v622 = vsel %vm597, inf, %v587
    %v623 = vsel %vm597, inf, %v588
    %v624 = vsel %vm597, inf, %v589
    %v625 = vsel %vm597, inf, %v590
    %v626 = vsel %vm597, inf, %v591
    %v627 = vsel %vm597, inf, %v592
    %v628 = vsel %vm597, inf, %v593
    %v629 = vsel %vm597, inf, %v594
    %v630 = vmin.f32 %v598, %v468
    %v631 = vmin.f32 %v599, %v471
    %v632 = vmin.f32 %v600, %v474
    %v633 = vmin.f32 %v601, %v477
    %v634 = vmin.f32 %v602, %v480
    %v635 = vmin.f32 %v603, %v483
    %v636 = vmin.f32 %v604, %v486
    %v637 = vmin.f32 %v605, %v489
    %v638 = vmin.f32 %v606, %v492
    %v639 = vmin.f32 %v607, %v495
    %v640 = vmin.f32 %v608, %v498
    %v641 = vmin.f32 %v609, %v501
    %v642 = vmin.f32 %v610, %v504
    %v643 = vmin.f32 %v611, %v507
    %v644 = vmin.f32 %v612, %v510
    %v645 = vmin.f32 %v613, %v513
    %v646 = vmin.f32 %v614, %v516
    %v647 = vmin.f32 %v615, %v519
    %v648 = vmin.f32 %v616, %v522
    %v649 = vmin.f32 %v617, %v525
    %v650 = vmin.f32 %v618, %v528
    %v651 = vmin.f32 %v619, %v531
    %v652 = vmin.f32 %v620, %v534
    %v653 = vmin.f32 %v621, %v537
    %v654 = vmin.f32 %v622, %v540
    %v655 = vmin.f32 %v623, %v543
    %v656 = vmin.f32 %v624, %v546
    %v657 = vmin.f32 %v625, %v549
    %v658 = vmin.f32 %v626, %v552
    %v659 = vmin.f32 %v627, %v555
    %v660 = vmin.f32 %v628, %v558
    %v661 = vmin.f32 %v629, %v561
    %vm662 = vcmask 7168
    %663 = vst.msk [vmem:[%s2] sm:$0xff] %vm662, %v630
    %664 = vst.msk [vmem:[%s2 + $0x8] sm:$0xff] %vm662, %v631
    %665 = vst.msk [vmem:[%s2 + $0x10] sm:$0xff] %vm662, %v632
    %666 = vst.msk [vmem:[%s2 + $0x18] sm:$0xff] %vm662, %v633
    %667 = vst.msk [vmem:[%s2 + $0x20] sm:$0xff] %vm662, %v634
    %668 = vst.msk [vmem:[%s2 + $0x28] sm:$0xff] %vm662, %v635
    %669 = vst.msk [vmem:[%s2 + $0x30] sm:$0xff] %vm662, %v636
    %670 = vst.msk [vmem:[%s2 + $0x38] sm:$0xff] %vm662, %v637
    %671 = vst.msk [vmem:[%s2 + $0x40] sm:$0xff] %vm662, %v638
    %672 = vst.msk [vmem:[%s2 + $0x48] sm:$0xff] %vm662, %v639
    %673 = vst.msk [vmem:[%s2 + $0x50] sm:$0xff] %vm662, %v640
    %674 = vst.msk [vmem:[%s2 + $0x58] sm:$0xff] %vm662, %v641
    %675 = vst.msk [vmem:[%s2 + $0x60] sm:$0xff] %vm662, %v642
    %676 = vst.msk [vmem:[%s2 + $0x68] sm:$0xff] %vm662, %v643
    %677 = vst.msk [vmem:[%s2 + $0x70] sm:$0xff] %vm662, %v644
    %678 = vst.msk [vmem:[%s2 + $0x78] sm:$0xff] %vm662, %v645
    %679 = vst.msk [vmem:[%s2 + $0x80] sm:$0xff] %vm662, %v646
    %680 = vst.msk [vmem:[%s2 + $0x88] sm:$0xff] %vm662, %v647
    %681 = vst.msk [vmem:[%s2 + $0x90] sm:$0xff] %vm662, %v648
    %682 = vst.msk [vmem:[%s2 + $0x98] sm:$0xff] %vm662, %v649
    %683 = vst.msk [vmem:[%s2 + $0xa0] sm:$0xff] %vm662, %v650
    %684 = vst.msk [vmem:[%s2 + $0xa8] sm:$0xff] %vm662, %v651
    %685 = vst.msk [vmem:[%s2 + $0xb0] sm:$0xff] %vm662, %v652
    %686 = vst.msk [vmem:[%s2 + $0xb8] sm:$0xff] %vm662, %v653
    %687 = vst.msk [vmem:[%s2 + $0xc0] sm:$0xff] %vm662, %v654
    %688 = vst.msk [vmem:[%s2 + $0xc8] sm:$0xff] %vm662, %v655
    %689 = vst.msk [vmem:[%s2 + $0xd0] sm:$0xff] %vm662, %v656
    %690 = vst.msk [vmem:[%s2 + $0xd8] sm:$0xff] %vm662, %v657
    %691 = vst.msk [vmem:[%s2 + $0xe0] sm:$0xff] %vm662, %v658
    %692 = vst.msk [vmem:[%s2 + $0xe8] sm:$0xff] %vm662, %v659
    %693 = vst.msk [vmem:[%s2 + $0xf0] sm:$0xff] %vm662, %v660
    %694 = vst.msk [vmem:[%s2 + $0xf8] sm:$0xff] %vm662, %v661
    %v695 = vmin.f32 %v402, %v406
    %v696 = vmin.f32 %v404, %v408
    %v697 = vmin.f32 %v695, %v410
    %v698 = vmin.f32 %v696, %v412
    %v699 = vmin.f32 %v697, %v414
    %v700 = vmin.f32 %v698, %v416
    %v701 = vmin.f32 %v699, %v418
    %v702 = vmin.f32 %v700, %v420
    %v703 = vmin.f32 %v701, %v422
    %v704 = vmin.f32 %v702, %v424
    %v705 = vmin.f32 %v703, %v426
    %v706 = vmin.f32 %v704, %v428
    %v707 = vmin.f32 %v705, %v430
    %v708 = vmin.f32 %v706, %v432
    %v709 = vmin.f32 %v707, %v434
    %v710 = vmin.f32 %v708, %v436
    %v711 = vmin.f32 %v709, %v438
    %v712 = vmin.f32 %v710, %v440
    %v713 = vmin.f32 %v711, %v442
    %v714 = vmin.f32 %v712, %v444
    %v715 = vmin.f32 %v713, %v446
    %v716 = vmin.f32 %v714, %v448
    %v717 = vmin.f32 %v715, %v450
    %v718 = vmin.f32 %v716, %v452
    %v719 = vmin.f32 %v717, %v454
    %v720 = vmin.f32 %v718, %v456
    %v721 = vmin.f32 %v719, %v458
    %v722 = vmin.f32 %v720, %v460
    %v723 = vmin.f32 %v721, %v462
    %v724 = vmin.f32 %v722, %v464
    %v725 = vmin.f32 %v723, %v724
    %v726 = vrot.slane %v725, 4
    %v727 = vmin.f32 %v725, %v726
    %v728 = vrot.slane %v727, 2
    %v729 = vmin.f32 %v727, %v728
    %v730 = vrot.slane %v729, 1
    %v731 = vmin.f32 %v729, %v730
    %v732 = vmin.f32 %v403, %v407
    %v733 = vmin.f32 %v405, %v409
    %v734 = vmin.f32 %v732, %v411
    %v735 = vmin.f32 %v733, %v413
    %v736 = vmin.f32 %v734, %v415
    %v737 = vmin.f32 %v735, %v417
    %v738 = vmin.f32 %v736, %v419
    %v739 = vmin.f32 %v737, %v421
    %v740 = vmin.f32 %v738, %v423
    %v741 = vmin.f32 %v739, %v425
    %v742 = vmin.f32 %v740, %v427
    %v743 = vmin.f32 %v741, %v429
    %v744 = vmin.f32 %v742, %v431
    %v745 = vmin.f32 %v743, %v433
    %v746 = vmin.f32 %v744, %v435
    %v747 = vmin.f32 %v745, %v437
    %v748 = vmin.f32 %v746, %v439
    %v749 = vmin.f32 %v747, %v441
    %v750 = vmin.f32 %v748, %v443
    %v751 = vmin.f32 %v749, %v445
    %v752 = vmin.f32 %v750, %v447
    %v753 = vmin.f32 %v751, %v449
    %v754 = vmin.f32 %v752, %v451
    %v755 = vmin.f32 %v753, %v453
    %v756 = vmin.f32 %v754, %v455
    %v757 = vmin.f32 %v755, %v457
    %v758 = vmin.f32 %v756, %v459
    %v759 = vmin.f32 %v757, %v461
    %v760 = vmin.f32 %v758, %v463
    %v761 = vmin.f32 %v759, %v465
    %v762 = vmin.f32 %v760, %v761
    %v763 = vrot.slane %v762, 4
    %v764 = vmin.f32 %v762, %v763
    %v765 = vrot.slane %v764, 2
    %v766 = vmin.f32 %v764, %v765
    %v767 = vrot.slane %v766, 1
    %v768 = vmin.f32 %v766, %v767
    %v771 = vcombine.low %v731, %v768
    %v773 = vunpack.c.l.s4 1966171168
    %v774 = vunpack.c.0.s8 %v773
    %v775 = vlaneseq
    %v776 = vshrl.u32 %v775, 7
    %v777 = vsub.s32 %v774, %v776
    %v778 = vrot.slane %v771, %v777
    %v780 = vunpack.c.l.s4 1966171168
    %v781 = vunpack.c.0.s8 %v780
    %v782 = vlaneseq
    %v783 = vshrl.u32 %v782, 7
    %v784 = vsub.s32 %v781, %v783
    %v785 = vrot.slane %v778, %v784
    %v787 = vlaneseq
    %vm788 = vcmp.ge.s32.totalorder %v787, 0
    %vm789 = vcmp.lt.s32.totalorder %v787, 256
    %vm790 = vmand %vm788, %vm789
    %791 = vst.msk [vmem:[#allocation2] sm:$0x3] %vm790, %v785
    // Predicated region
    $region10: #{tpu_custom_call.1} parent=1 // pred_check
      _
    $region11: #{tpu_custom_call.1} parent=1 // pred_check_branch
      %793 = sbr.rel (0) target = $region13
    $region12: #{tpu_custom_call.1} parent=1 // pred_region
      _
    $region13: #{tpu_custom_call.1} parent=1 // pred_fallthru
      _
    // Predicated region
    $region14: #{tpu_custom_call.1} parent=1 // pred_check
      _
    $region15: #{tpu_custom_call.1} parent=1 // pred_check_branch
      %795 = sbr.rel (0) target = $region17
    $region16: #{tpu_custom_call.1} parent=1 // pred_region
      %s797 = ssub.s32 32, 32
      %798 = vsyncadd [#allocation3], %s797
      %s800 = sshll.u32 [#allocation2], 4
      %s801 = int_to_ptr.vmem [resolvable:$true] %s800
      %803 = dma.vmem_to_hbm [thread:$0]  %s801, 32, %s3, [#allocation3]
    $region17: #{tpu_custom_call.1} parent=1 // pred_fallthru
      _
    // Predicated region
    $region18: #{tpu_custom_call.1} parent=1 // pred_check
      _
    $region19: #{tpu_custom_call.1} parent=1 // pred_check_branch
      %805 = sbr.rel (0) target = $region21
    $region20: #{tpu_custom_call.1} parent=1 // pred_region
      _
    $region21: #{tpu_custom_call.1} parent=1 // pred_fallthru
      _
    // Predicated region
    $region22: #{tpu_custom_call.1} parent=1 // pred_check
      _
    $region23: #{tpu_custom_call.1} parent=1 // pred_check_branch
      %807 = sbr.rel (0) target = $region25
    $region24: #{tpu_custom_call.1} parent=1 // pred_region
      %808 = dma.done [#allocation3], 32
    $region25: #{tpu_custom_call.1} parent=1 // pred_fallthru
      _
    %809 = vsyncpa [#allocation3], 1

</llo_original>
